<compile_context>
chip_gen: v5e
topology: v5e:2x2
jax: 0.10.0
libtpu: 0.0.40
codegen_flags: <defaults>
</compile_context>

<pallas_src>
import functools

import jax
import jax.numpy as jnp
from jax.experimental import pallas as pl
from jax.experimental.pallas import tpu as pltpu


def _round_up(x, m):
    return (x + m - 1) // m * m


def _tpu_vmem_limit_bytes():
    """Scoped-VMEM limit sized per part: ~40 MiB on 64 MiB parts (v7x), 64 MiB on 128 MiB parts."""
    cap = 128 * 1024 * 1024
    try:
        cap = int(getattr(pltpu.get_tpu_info(), "vmem_capacity_bytes", cap))
    except Exception:
        pass
    if cap <= 64 * 1024 * 1024:
        return 40 * 1024 * 1024          # v7x-class: leave headroom for compiler scratch/spills
    return 64 * 1024 * 1024              # v5e / v6e: 128 MiB physical VMEM


def _num_tensorcores():
    """2 TensorCores per chip on v7x-class parts, 1 on v5e/v6e."""
    try:
        kind = jax.devices()[0].device_kind.lower()
        if "v7" in kind or "7x" in kind:
            return 2
    except Exception:
        pass
    return 1


def _call_with_fallback(build_and_call):
    """Try single-buffered constant blocks (pl.Buffered(1)); fall back to default buffering."""
    try:
        return build_and_call(True)
    except Exception:
        return build_and_call(False)


# --------------------------------------------------------------------------------------
# Phase 1: input projection for all timesteps (parallel over row tiles, fully uses MXU).
# --------------------------------------------------------------------------------------
def _input_proj_kernel(x_ref, wih_ref, b_ref, gx_ref):
    # x: (rows, D) f32 -> cast to bf16 here (saves a wrapper HBM convert pass)
    acc = jnp.dot(x_ref[...].astype(jnp.bfloat16), wih_ref[...],
                  preferred_element_type=jnp.float32)
    gx_ref[...] = (acc + b_ref[...]).astype(gx_ref.dtype)       # bf16 store


def _phase1_row_tile(rows, d, gp, budget):
    # Largest MXU-friendly row tile that divides `rows` and fits the VMEM budget.
    # `rows` is always a multiple of 8 (T is padded to a multiple of 8 by the wrapper).
    for cand in (1024, 512, 256, 128, 64, 32, 16, 8):
        if rows % cand:
            continue
        need = (2 * cand * d * 4           # x block,  f32, double-buffered
                + 2 * cand * gp * 2        # gx block, bf16, double-buffered
                + d * gp * 2 + gp * 4)     # W_ih (bf16) + bias (f32), single-buffered
        if need <= budget:
            return cand
    return 8   # TODO(synk): K-tile the projection if D*4H alone exceeds the VMEM budget.


# --------------------------------------------------------------------------------------
# Phase 2: serial recurrence. One grid step == one (batch tile, chunk of tc timesteps).
# --------------------------------------------------------------------------------------
def _lstm_recurrence_kernel(maxlen_ref, gx_ref, len_ref, h0_ref, c0_ref, whh_ref,
                            out_ref, h_sc, c_sc, *, hidden_pad, time_chunk):
    Hp = hidden_pad
    tc = time_chunk
    bi = pl.program_id(0)                  # batch tile ("parallel": split across TCs on v7x)
    ti = pl.program_id(1)                  # time chunk ("arbitrary": sequential)

    @pl.when(ti == 0)
    def _():
        # (re)load the initial state at the start of each batch tile's time sweep
        h_sc[...] = h0_ref[...].astype(jnp.float32)
        c_sc[...] = c0_ref[...].astype(jnp.float32)

    chunk_start = ti * tc

    @pl.when(chunk_start >= maxlen_ref[bi])
    def _():
        # every sequence in THIS batch tile is finished: emit zeros, keep state, skip compute
        out_ref[...] = jnp.zeros_like(out_ref)

    @pl.when(chunk_start < maxlen_ref[bi])
    def _():
        whh = whh_ref[...]                 # (Hp, 4Hp) bf16, resident for the whole chunk
        lengths = len_ref[...]             # (tb, 1) int32
        h = h_sc[...]                      # f32 carries live in vregs across the unrolled loop
        c = c_sc[...]

        # Static (fully unrolled) time loop: indices into the batch-first (tb, tc, .) blocks
        # are compile-time constants (no dynamic sublane slicing); per-step temporaries die
        # every iteration, so vreg pressure is per-step, not per-chunk.
        for s in range(tc):
            gates = gx_ref[:, s, :].astype(jnp.float32) + jnp.dot(
                h.astype(jnp.bfloat16), whh, preferred_element_type=jnp.float32)
            # PyTorch gate order i, f, g, o; Hp is a multiple of 128 -> lane-aligned slices.
            i_g = jax.nn.sigmoid(gates[:, 0 * Hp:1 * Hp])
            f_g = jax.nn.sigmoid(gates[:, 1 * Hp:2 * Hp])
            g_g = jnp.tanh(gates[:, 2 * Hp:3 * Hp])
            o_g = jax.nn.sigmoid(gates[:, 3 * Hp:4 * Hp])
            # TODO(synk): if a bundle dump shows the EUP slot binding on v6e/v7x, run the
            # sigmoid/tanh in bf16 (keep f32 state math); do NOT do this on v5e.
            c_new = f_g * c + i_g * g_g
            h_new = o_g * jnp.tanh(c_new)

            valid = (chunk_start + s) < lengths                  # (tb, 1) bool
            out_ref[:, s, :] = jnp.where(valid, h_new, 0.0).astype(out_ref.dtype)
            h = jnp.where(valid, h_new, h)
            c = jnp.where(valid, c_new, c)

        # TODO(synk): for very large Hp, drive the MXU explicitly (push W_hh once per chunk,
        # accumulate per timestep) if the bundle shows weight re-staging limiting step latency.
        h_sc[...] = h
        c_sc[...] = c


def _phase2_tiles(batch, t_pad, hp, gp, n_cores, budget):
    """VMEM-budget-aware (batch tile, time chunk) selection."""
    # Split the batch across the 'parallel' axis only on 2-TC parts and only when the split
    # keeps an (8,128)-legal tile; on single-TC v5e/v6e keep tb = B (no extra grid overhead).
    tb = batch // 2 if (n_cores >= 2 and batch % 16 == 0) else batch
    # TODO(synk): pad B to a multiple of 16 to enable the v7x megacore split for odd batches.

    def need(tb_, tc_):
        return (2 * tb_ * tc_ * gp * 2     # gx block  (bf16, double-buffered)
                + 2 * tb_ * tc_ * hp * 4   # out block (f32, double-buffered)
                + hp * gp * 2              # W_hh (bf16, single-buffered via pl.Buffered(1))
                + 2 * 2 * tb_ * hp * 4     # h0 + c0 blocks (double-buffered)
                + 2 * tb_ * hp * 4)        # h / c carry scratch

    while True:
        # tc is fully unrolled in-kernel; cap it lower when per-step state is large (vregs).
        cands = (32, 16, 8) if tb * hp <= 8 * 1024 else (16, 8)
        for tc in cands:
            if t_pad % tc == 0 and need(tb, tc) <= budget:
                return tb, tc
        nxt = tb // 2
        if nxt >= 8 and nxt % 8 == 0 and batch % nxt == 0:
            tb = nxt                       # shrink the batch tile if even tc=8 does not fit
        else:
            return tb, 8


def decoder_lstm_forward(batch_data, seq_lengths, hidden_state_init, params):
    """
    batch_data:        (B, T, D_in) float32, batch-first (PyTorch-like)
    seq_lengths:       (B,)         int32
    hidden_state_init: (h0, c0) each (B, H) float32
    params:            dict with w_ih (D_in, 4H), w_hh (H, 4H), bias (1, 4H); gate order i,f,g,o
    returns: (output (B, T, H) float32, seq_lengths); padded steps emit zeros, h/c carried.
    """
    h0, c0 = hidden_state_init
    w_ih, w_hh, bias = params["w_ih"], params["w_hh"], params["bias"]

    B, T, D = batch_data.shape
    H = h0.shape[-1]

    vmem_limit = _tpu_vmem_limit_bytes()
    budget = int(0.6 * vmem_limit)          # keep double-buffering + compiler scratch alive
    n_cores = _num_tensorcores()

    # ---- exact zero-padding: H -> multiple of 128 (lane tile), T -> multiple of 8 ----
    Hp = max(128, _round_up(H, 128))
    T_pad = _round_up(T, 8)
    Gp = 4 * Hp

    def pad_gate_cols(w):
        # (..., 4H) -> (..., 4Hp): pad each of the i,f,g,o blocks independently
        if Hp == H:
            return w
        parts = [w[..., k * H:(k + 1) * H] for k in range(4)]
        cfg = [(0, 0)] * (w.ndim - 1) + [(0, Hp - H)]
        return jnp.concatenate([jnp.pad(p, cfg) for p in parts], axis=-1)

    w_ih_p = pad_gate_cols(w_ih)
    w_hh_p = pad_gate_cols(jnp.pad(w_hh, ((0, Hp - H), (0, 0))) if Hp != H else w_hh)
    bias_p = pad_gate_cols(bias).astype(jnp.float32)
    if Hp != H:
        h0_p = jnp.pad(h0, ((0, 0), (0, Hp - H))).astype(jnp.float32)
        c0_p = jnp.pad(c0, ((0, 0), (0, Hp - H))).astype(jnp.float32)
    else:
        h0_p = h0.astype(jnp.float32)
        c0_p = c0.astype(jnp.float32)

    w_ih_bf = w_ih_p.astype(jnp.bfloat16)
    w_hh_bf = w_hh_p.astype(jnp.bfloat16)

    x = batch_data
    if T_pad != T:
        x = jnp.pad(x, ((0, 0), (0, T_pad - T), (0, 0)))
    x_rows = x.reshape(B * T_pad, D)        # batch-first flatten: free, NO HBM transpose
    rows = B * T_pad

    # -------- Phase 1: hoisted input projection over all B*T rows (batch-first) --------
    row_tile = _phase1_row_tile(rows, D, Gp, budget)

    def phase1(single_buffer):
        const = dict(pipeline_mode=pl.Buffered(1)) if single_buffer else {}
        return pl.pallas_call(
            _input_proj_kernel,
            out_shape=jax.ShapeDtypeStruct((rows, Gp), jnp.bfloat16),
            grid_spec=pltpu.PrefetchScalarGridSpec(
                num_scalar_prefetch=0,
                grid=(rows // row_tile,),
                in_specs=[
                    pl.BlockSpec((row_tile, D), lambda i: (i, 0)),
                    pl.BlockSpec((D, Gp), lambda i: (0, 0), **const),   # W_ih: constant block
                    pl.BlockSpec((1, Gp), lambda i: (0, 0), **const),   # bias: constant block
                ],
                out_specs=pl.BlockSpec((row_tile, Gp), lambda i: (i, 0)),
            ),
            compiler_params=pltpu.CompilerParams(
                dimension_semantics=("parallel",),
                vmem_limit_bytes=vmem_limit),
        )(x_rows, w_ih_bf, bias_p)

    gx = _call_with_fallback(phase1).reshape(B, T_pad, Gp)      # batch-first, bf16

    # -------- Phase 2: serial recurrence --------
    tb, tc = _phase2_tiles(B, T_pad, Hp, Gp, n_cores, budget)
    nb, nt = B // tb, T_pad // tc

    lengths = seq_lengths.astype(jnp.int32).reshape(B, 1)
    # per-batch-tile max length -> a tile whose sequences all finished skips whole chunks
    tile_maxlen = seq_lengths.astype(jnp.int32).reshape(nb, tb).max(axis=1)

    kernel = functools.partial(_lstm_recurrence_kernel, hidden_pad=Hp, time_chunk=tc)

    def phase2(single_buffer):
        const = dict(pipeline_mode=pl.Buffered(1)) if single_buffer else {}
        return pl.pallas_call(
            kernel,
            out_shape=jax.ShapeDtypeStruct((B, T_pad, Hp), jnp.float32),
            grid_spec=pltpu.PrefetchScalarGridSpec(
                num_scalar_prefetch=1,                            # per-tile max lengths -> SMEM
                grid=(nb, nt),                                    # (batch tiles, time chunks)
                in_specs=[
                    pl.BlockSpec((tb, tc, Gp), lambda bi, ti, ml: (bi, ti, 0)),   # G_x chunk
                    pl.BlockSpec((tb, 1), lambda bi, ti, ml: (bi, 0)),            # seq lengths
                    pl.BlockSpec((tb, Hp), lambda bi, ti, ml: (bi, 0)),           # h0
                    pl.BlockSpec((tb, Hp), lambda bi, ti, ml: (bi, 0)),           # c0
                    pl.BlockSpec((Hp, Gp), lambda bi, ti, ml: (0, 0), **const),   # W_hh (bf16)
                ],
                out_specs=pl.BlockSpec((tb, tc, Hp), lambda bi, ti, ml: (bi, ti, 0)),
                scratch_shapes=[
                    pltpu.VMEM((tb, Hp), jnp.float32),   # h carry
                    pltpu.VMEM((tb, Hp), jnp.float32),   # c carry
                ],
            ),
            compiler_params=pltpu.CompilerParams(
                dimension_semantics=("parallel", "arbitrary"),    # batch parallel, time serial
                vmem_limit_bytes=vmem_limit),
        )(tile_maxlen, gx, lengths, h0_p, c0_p, w_hh_bf)

    out_full = _call_with_fallback(phase2)
    output = out_full[:, :T, :H]            # drop time/lane padding (no transpose anywhere)
    return output, seq_lengths


def init_params(key, input_dim, hidden_dim):
    """Deterministic PyTorch-LSTM-style init: U(-1/sqrt(H), 1/sqrt(H))."""
    k1, k2, k3, k4 = jax.random.split(key, 4)
    s = 1.0 / jnp.sqrt(jnp.float32(hidden_dim))
    w_ih = jax.random.uniform(k1, (input_dim, 4 * hidden_dim), jnp.float32, -s, s)
    w_hh = jax.random.uniform(k2, (hidden_dim, 4 * hidden_dim), jnp.float32, -s, s)
    b_ih = jax.random.uniform(k3, (1, 4 * hidden_dim), jnp.float32, -s, s)
    b_hh = jax.random.uniform(k4, (1, 4 * hidden_dim), jnp.float32, -s, s)
    return {"w_ih": w_ih, "w_hh": w_hh, "bias": b_ih + b_hh}


def _lstm_reference(batch_data, seq_lengths, h0, c0, params):
    """Pure-JAX f32 reference (lax.scan) with identical packed-sequence semantics."""
    w_ih, w_hh, bias = params["w_ih"], params["w_hh"], params["bias"]
    H = h0.shape[-1]
    x_tm = jnp.transpose(batch_data, (1, 0, 2)).astype(jnp.float32)
    T = x_tm.shape[0]

    def step(carry, inp):
        h, c = carry
        x_t, t = inp
        gates = x_t @ w_ih + h @ w_hh + bias
        i = jax.nn.sigmoid(gates[:, 0 * H:1 * H])
        f = jax.nn.sigmoid(gates[:, 1 * H:2 * H])
        g = jnp.tanh(gates[:, 2 * H:3 * H])
        o = jax.nn.sigmoid(gates[:, 3 * H:4 * H])
        c_new = f * c + i * g
        h_new = o * jnp.tanh(c_new)
        valid = (t < seq_lengths)[:, None]
        h = jnp.where(valid, h_new, h)
        c = jnp.where(valid, c_new, c)
        return (h, c), jnp.where(valid, h_new, 0.0)

    (_, _), outs = jax.lax.scan(step, (h0, c0), (x_tm, jnp.arange(T, dtype=jnp.int32)))
    return jnp.transpose(outs, (1, 0, 2))


if __name__ == "__main__":
    # small shapes implied by the module: layerNum=1, directionNum=1
    B, T, D_IN, HID = 2, 8, 16, 32

    key = jax.random.PRNGKey(0)
    k_x, k_h, k_c, k_p = jax.random.split(key, 4)

    batch_data = jax.random.normal(k_x, (B, T, D_IN), jnp.float32)
    seq_lengths = jnp.array([8, 5], dtype=jnp.int32)
    h0 = jax.random.normal(k_h, (B, HID), jnp.float32)
    c0 = jax.random.normal(k_c, (B, HID), jnp.float32)
    params = init_params(k_p, D_IN, HID)

    output, seq_out = decoder_lstm_forward(batch_data, seq_lengths, (h0, c0), params)
    output = jax.block_until_ready(output)

    # correctness checks: shape, zeroed padding, and match against the f32 reference
    assert output.shape == (B, T, HID)
    assert bool(jnp.all(output[1, 5:, :] == 0.0))
    ref = _lstm_reference(batch_data, seq_lengths, h0, c0, params)
    assert bool(jnp.allclose(output, ref, atol=2e-2, rtol=2e-2)), \
        f"max abs diff {jnp.max(jnp.abs(output - ref))}"

    print("KERNEL_OK")
</pallas_src>

<mosaic_0001>
module attributes {stable_mosaic.version = 11 : i64} {
  func.func @_input_proj_kernel(%arg0: i32, %arg1: memref<16x16xf32, #tpu.memory_space<vmem>>, %arg2: memref<16x512xbf16, #tpu.memory_space<vmem>>, %arg3: memref<1x512xf32, #tpu.memory_space<vmem>>, %arg4: memref<16x512xbf16, #tpu.memory_space<vmem>>) attributes {dimension_semantics = [#tpu.dimension_semantics<parallel>], iteration_bounds = array<i64: 1>, scalar_prefetch = 0 : i64, scratch_operands = 0 : i64, tpu.core_type = #tpu.core_type<tc>, window_params = [{transform_indices = @transform_0, window_bounds = array<i64: 16, 16>}, {pipeline_mode = #tpu.pipeline_mode<synchronous>, transform_indices = @transform_1, window_bounds = array<i64: 16, 512>}, {pipeline_mode = #tpu.pipeline_mode<synchronous>, transform_indices = @transform_2, window_bounds = array<i64: 1, 512>}, {transform_indices = @transform_3, window_bounds = array<i64: 16, 512>}]} {
    %c0 = arith.constant 0 : index
    %c0_0 = arith.constant 0 : index
    %0 = vector.load %arg1[%c0, %c0_0] : memref<16x16xf32, #tpu.memory_space<vmem>>, vector<16x16xf32>
    %1 = arith.truncf %0 : vector<16x16xf32> to vector<16x16xbf16>
    %c0_1 = arith.constant 0 : index
    %c0_2 = arith.constant 0 : index
    %2 = vector.load %arg2[%c0_1, %c0_2] : memref<16x512xbf16, #tpu.memory_space<vmem>>, vector<16x512xbf16>
    %cst = arith.constant dense<0.000000e+00> : vector<16x512xf32>
    %3 = tpu.matmul %1, %2, %cst {dimension_numbers = #tpu.dot_dimension_numbers<[1], [0], [0], [1], [0, 0, 1, 1], [], []>} : vector<16x16xbf16>, vector<16x512xbf16>, vector<16x512xf32> -> vector<16x512xf32>
    %c0_3 = arith.constant 0 : index
    %c0_4 = arith.constant 0 : index
    %4 = vector.load %arg3[%c0_3, %c0_4] : memref<1x512xf32, #tpu.memory_space<vmem>>, vector<1x512xf32>
    %5 = vector.broadcast %4 : vector<1x512xf32> to vector<16x512xf32>
    %6 = arith.addf %3, %5 : vector<16x512xf32>
    %7 = arith.truncf %6 : vector<16x512xf32> to vector<16x512xbf16>
    %c0_5 = arith.constant 0 : index
    %c0_6 = arith.constant 0 : index
    %8 = vector.load %arg4[%c0_5, %c0_6] : memref<16x512xbf16, #tpu.memory_space<vmem>>, vector<16x512xbf16>
    tpu.vector_store %arg4[%c0_5, %c0_6], %7 {strides = array<i32>} : memref<16x512xbf16, #tpu.memory_space<vmem>>, vector<16x512xbf16>,
    return
  }
  func.func @transform_0(%arg0: i32) -> (i32, i32) {
    %c0_i32 = arith.constant 0 : i32
    %c0_i32_0 = arith.constant 0 : i32
    return %arg0, %c0_i32 : i32, i32
  }
  func.func @transform_1(%arg0: i32) -> (i32, i32) {
    %c0_i32 = arith.constant 0 : i32
    %c0_i32_0 = arith.constant 0 : i32
    %c0_i32_1 = arith.constant 0 : i32
    return %c0_i32, %c0_i32_0 : i32, i32
  }
  func.func @transform_2(%arg0: i32) -> (i32, i32) {
    %c0_i32 = arith.constant 0 : i32
    %c0_i32_0 = arith.constant 0 : i32
    %c0_i32_1 = arith.constant 0 : i32
    return %c0_i32, %c0_i32_0 : i32, i32
  }
  func.func @transform_3(%arg0: i32) -> (i32, i32) {
    %c0_i32 = arith.constant 0 : i32
    %c0_i32_0 = arith.constant 0 : i32
    return %arg0, %c0_i32 : i32, i32
  }
}

module attributes {stable_mosaic.version = 11 : i64} {
  func.func @_input_proj_kernel(%arg0: i32, %arg1: memref<16x16xf32, #tpu.memory_space<vmem>>, %arg2: memref<16x512xbf16, #tpu.memory_space<vmem>>, %arg3: memref<1x512xf32, #tpu.memory_space<vmem>>, %arg4: memref<16x512xbf16, #tpu.memory_space<vmem>>) attributes {dimension_semantics = [#tpu.dimension_semantics<parallel>], iteration_bounds = array<i64: 1>, scalar_prefetch = 0 : i64, scratch_operands = 0 : i64, tpu.core_type = #tpu.core_type<tc>, window_params = [{transform_indices = @transform_0, window_bounds = array<i64: 16, 16>}, {pipeline_mode = #tpu.pipeline_mode<synchronous>, transform_indices = @transform_1, window_bounds = array<i64: 16, 512>}, {pipeline_mode = #tpu.pipeline_mode<synchronous>, transform_indices = @transform_2, window_bounds = array<i64: 1, 512>}, {transform_indices = @transform_3, window_bounds = array<i64: 16, 512>}]} {
    %c0 = arith.constant 0 : index
    %c0_0 = arith.constant 0 : index
    %0 = vector.load %arg1[%c0, %c0_0] : memref<16x16xf32, #tpu.memory_space<vmem>>, vector<16x16xf32>
    %1 = arith.truncf %0 : vector<16x16xf32> to vector<16x16xbf16>
    %c0_1 = arith.constant 0 : index
    %c0_2 = arith.constant 0 : index
    %2 = vector.load %arg2[%c0_1, %c0_2] : memref<16x512xbf16, #tpu.memory_space<vmem>>, vector<16x512xbf16>
    %cst = arith.constant dense<0.000000e+00> : vector<16x512xf32>
    %3 = tpu.matmul %1, %2, %cst {dimension_numbers = #tpu.dot_dimension_numbers<[1], [0], [0], [1], [0, 0, 1, 1], [], []>} : vector<16x16xbf16>, vector<16x512xbf16>, vector<16x512xf32> -> vector<16x512xf32>
    %c0_3 = arith.constant 0 : index
    %c0_4 = arith.constant 0 : index
    %4 = vector.load %arg3[%c0_3, %c0_4] : memref<1x512xf32, #tpu.memory_space<vmem>>, vector<1x512xf32>
    %5 = vector.broadcast %4 : vector<1x512xf32> to vector<16x512xf32>
    %6 = arith.addf %3, %5 : vector<16x512xf32>
    %7 = arith.truncf %6 : vector<16x512xf32> to vector<16x512xbf16>
    %c0_5 = arith.constant 0 : index
    %c0_6 = arith.constant 0 : index
    %8 = vector.load %arg4[%c0_5, %c0_6] : memref<16x512xbf16, #tpu.memory_space<vmem>>, vector<16x512xbf16>
    tpu.vector_store %arg4[%c0_5, %c0_6], %7 {strides = array<i32>} : memref<16x512xbf16, #tpu.memory_space<vmem>>, vector<16x512xbf16>,
    return
  }
  func.func @transform_0(%arg0: i32) -> (i32, i32) {
    %c0_i32 = arith.constant 0 : i32
    %c0_i32_0 = arith.constant 0 : i32
    return %arg0, %c0_i32 : i32, i32
  }
  func.func @transform_1(%arg0: i32) -> (i32, i32) {
    %c0_i32 = arith.constant 0 : i32
    %c0_i32_0 = arith.constant 0 : i32
    %c0_i32_1 = arith.constant 0 : i32
    return %c0_i32, %c0_i32_0 : i32, i32
  }
  func.func @transform_2(%arg0: i32) -> (i32, i32) {
    %c0_i32 = arith.constant 0 : i32
    %c0_i32_0 = arith.constant 0 : i32
    %c0_i32_1 = arith.constant 0 : i32
    return %c0_i32, %c0_i32_0 : i32, i32
  }
  func.func @transform_3(%arg0: i32) -> (i32, i32) {
    %c0_i32 = arith.constant 0 : i32
    %c0_i32_0 = arith.constant 0 : i32
    return %arg0, %c0_i32 : i32, i32
  }
}

</mosaic_0001>

<llo_original>
// kernel: tpu_custom_call.1
$region0: #{tpu_custom_call.1}
  #allocation0 [shape = 'u32[]', space=smem, size = 0x4, offset = 0x4, fixed_abs, tag = 'smem constant byte address 0x4 - core index']
  #allocation1 [shape = 'u32[72,128]{1,0:T(1,128)}', space=vmem, size = 0x9000, scoped, tag = 'internal scratch']
  %s0 = inlined_call_operand.hbm [shape: f32[16,16], index: 0, kind: input, shape index: {}]
  %s1 = inlined_call_operand.hbm [shape: bf16[16,512], index: 1, kind: input, shape index: {}]
  %s2 = inlined_call_operand.hbm [shape: f32[1,512], index: 2, kind: input, shape index: {}]
  %s3 = inlined_call_operand.hbm [shape: bf16[16,512], index: 3, kind: output, shape index: {}]
  %s4 = sld [smem:[#allocation0]]
  $region34: #{tpu_custom_call.1} parent=0
    _
  %s6 = ssub.s32 1, %s4
  %s7 = scalar_select 0, %s6, %s4
  $region1: #{tpu_custom_call.1} parent=0
    #allocation2 [shape = 'u8[8192]{0}', space=vmem, size = 0x2000, scoped, tag = 'input window, operand 0, single buffered']
    #allocation3 [shape = 's32[1]{0}', space=sflag, size = 0x4, scoped, tag = 'scoped memory for tpu_custom_call.1']
    #allocation4 [shape = 's32[1]{0}', space=sflag, size = 0x4, scoped, tag = 'scoped memory for tpu_custom_call.1']
    #allocation5 [shape = 'u8[16384]{0}', space=vmem, size = 0x4000, scoped, tag = 'input window, operand 1, single buffered']
    #allocation6 [shape = 's32[1]{0}', space=sflag, size = 0x4, scoped, tag = 'scoped memory for tpu_custom_call.1']
    #allocation7 [shape = 'u8[2048]{0}', space=vmem, size = 0x800, scoped, tag = 'input window, operand 2, single buffered']
    #allocation8 [shape = 'u8[16384]{0}', space=vmem, size = 0x4000, scoped, tag = 'output window, operand 0, single buffered']
    %8 = vsyncpa [#allocation3], 0
    %9 = vsyncpa [#allocation6], 0
    %10 = vsyncpa [#allocation4], 0
    // Predicated region
    $region2: #{tpu_custom_call.1} parent=1 // pred_check
      _
    $region3: #{tpu_custom_call.1} parent=1 // pred_check_branch
      %12 = sbr.rel (0) target = $region5
    $region4: #{tpu_custom_call.1} parent=1 // pred_region
      %14 = vsyncadd [#allocation3], 0
      %s15 = sshll.u32 %s0, 4
      %s16 = int_to_ptr.hbm [resolvable:$true] %s15
      %s17 = sshll.u32 [#allocation2], 4
      %s18 = int_to_ptr.vmem [resolvable:$true] %s17
      %23 = dma.hbm_to_vmem [thread:$0]  %s16, 256, %s18, [#allocation3], 128, 128, 8
    $region5: #{tpu_custom_call.1} parent=1 // pred_fallthru
      _
    // Predicated region
    $region6: #{tpu_custom_call.1} parent=1 // pred_check
      _
    $region7: #{tpu_custom_call.1} parent=1 // pred_check_branch
      %25 = sbr.rel (0) target = $region9
    $region8: #{tpu_custom_call.1} parent=1 // pred_region
      %27 = vsyncadd [#allocation6], 0
      %s28 = sshll.u32 %s1, 4
      %s29 = int_to_ptr.hbm [resolvable:$true] %s28
      %s30 = sshll.u32 [#allocation5], 4
      %s31 = int_to_ptr.vmem [resolvable:$true] %s30
      %36 = dma.hbm_to_vmem [thread:$0]  %s29, 512, %s31, [#allocation6], 256, 256, 16
    $region9: #{tpu_custom_call.1} parent=1 // pred_fallthru
      _
    // Predicated region
    $region10: #{tpu_custom_call.1} parent=1 // pred_check
      _
    $region11: #{tpu_custom_call.1} parent=1 // pred_check_branch
      %38 = sbr.rel (0) target = $region13
    $region12: #{tpu_custom_call.1} parent=1 // pred_region
      %40 = vsyncadd [#allocation6], 0
      %s42 = sshll.u32 %s2, 4
      %s43 = int_to_ptr.hbm [resolvable:$true] %s42
      %s44 = sshll.u32 [#allocation7], 4
      %s45 = int_to_ptr.vmem [resolvable:$true] %s44
      %47 = dma.hbm_to_vmem [thread:$0]  %s43, 64, %s45, [#allocation6]
    $region13: #{tpu_custom_call.1} parent=1 // pred_fallthru
      _
    // Predicated region
    $region14: #{tpu_custom_call.1} parent=1 // pred_check
      _
    $region15: #{tpu_custom_call.1} parent=1 // pred_check_branch
      %49 = sbr.rel (0) target = $region17
    $region16: #{tpu_custom_call.1} parent=1 // pred_region
      %51 = dma.done [#allocation3], 256
    $region17: #{tpu_custom_call.1} parent=1 // pred_fallthru
      _
    // Predicated region
    $region18: #{tpu_custom_call.1} parent=1 // pred_check
      _
    $region19: #{tpu_custom_call.1} parent=1 // pred_check_branch
      %53 = sbr.rel (0) target = $region21
    $region20: #{tpu_custom_call.1} parent=1 // pred_region
      %55 = dma.done [#allocation6], 512
    $region21: #{tpu_custom_call.1} parent=1 // pred_fallthru
      _
    // Predicated region
    $region22: #{tpu_custom_call.1} parent=1 // pred_check
      _
    $region23: #{tpu_custom_call.1} parent=1 // pred_check_branch
      %57 = sbr.rel (0) target = $region25
    $region24: #{tpu_custom_call.1} parent=1 // pred_region
      %59 = dma.done [#allocation6], 64
    $region25: #{tpu_custom_call.1} parent=1 // pred_fallthru
      _
    %v61 = vld [vmem:[#allocation2] sm:$0xff]
    %v62 = vld [vmem:[#allocation2 + $0x8] sm:$0xff]
    %v63 = vpack.c.bf16 %v62, %v61
    %v64 = vld [vmem:[#allocation5] sm:$0xff]
    %v65 = vld [vmem:[#allocation5 + $0x8] sm:$0xff]
    %v66 = vld [vmem:[#allocation5 + $0x10] sm:$0xff]
    %v67 = vld [vmem:[#allocation5 + $0x18] sm:$0xff]
    %v68 = vld [vmem:[#allocation7] sm:$0xf]
    %v70 = vperm.slane %v68, 0
    %v71 = vperm.slane %v68, 1
    %v72 = vperm.slane %v68, 2
    %v73 = vperm.slane %v68, 3
    %v82 = vunpack.c.l.b16 %v64
    %v83 = vunpack.c.h.b16 %v64
    %v84 = vunpack.c.l.b16 %v65
    %v85 = vunpack.c.h.b16 %v65
    %v86 = vunpack.c.l.b16 %v66
    %v87 = vunpack.c.h.b16 %v66
    %v88 = vunpack.c.l.b16 %v67
    %v89 = vunpack.c.h.b16 %v67
    %v90 = vpack.c.b16 %v86, %v82
    %v91 = vpack.c.b16 %v87, %v83
    %v92 = vpack.c.b16 %v88, %v84
    %v93 = vpack.c.b16 %v89, %v85
    %vm98 = vcmask 130048
    %v100 = vsel %vm98, %v63, 0
    %102 = vmatpush.bf16.msra.mxu0 0
    %103 = vmatpush.bf16.msra.mxu0 0
    %104 = vmatpush.bf16.msra.mxu0 0
    %105 = vmatpush.bf16.msra.mxu0 0
    %106 = vmatpush.bf16.msra.mxu0 0
    %107 = vmatpush.bf16.msra.mxu0 0
    %108 = vmatpush.bf16.msra.mxu0 0
    %109 = vmatpush.bf16.msra.mxu0 %v90
    %110 = vmatmul.bf16.gmra.mxu0 %v100
    %v111 = vpop.f32.mrf.mxu0
    %v112 = vadd.f32 %v70, %v111
    %v113 = vpop.f32.mrf.mxu0
    %v114 = vadd.f32 %v70, %v113
    %115 = vdwg.mxu0
    %116 = vmatpush.bf16.msra.mxu0 0
    %117 = vmatpush.bf16.msra.mxu0 0
    %118 = vmatpush.bf16.msra.mxu0 0
    %119 = vmatpush.bf16.msra.mxu0 0
    %120 = vmatpush.bf16.msra.mxu0 0
    %121 = vmatpush.bf16.msra.mxu0 0
    %122 = vmatpush.bf16.msra.mxu0 0
    %123 = vmatpush.bf16.msra.mxu0 %v91
    %124 = vmatmul.bf16.gmra.mxu0 %v100
    %v125 = vpop.f32.mrf.mxu0
    %v126 = vadd.f32 %v71, %v125
    %v127 = vpop.f32.mrf.mxu0
    %v128 = vadd.f32 %v71, %v127
    %129 = vdwg.mxu0
    %130 = vmatpush.bf16.msra.mxu0 0
    %131 = vmatpush.bf16.msra.mxu0 0
    %132 = vmatpush.bf16.msra.mxu0 0
    %133 = vmatpush.bf16.msra.mxu0 0
    %134 = vmatpush.bf16.msra.mxu0 0
    %135 = vmatpush.bf16.msra.mxu0 0
    %136 = vmatpush.bf16.msra.mxu0 0
    %137 = vmatpush.bf16.msra.mxu0 %v92
    %138 = vmatmul.bf16.gmra.mxu0 %v100
    %v139 = vpop.f32.mrf.mxu0
    %v140 = vadd.f32 %v72, %v139
    %v141 = vpop.f32.mrf.mxu0
    %v142 = vadd.f32 %v72, %v141
    %143 = vdwg.mxu0
    %144 = vmatpush.bf16.msra.mxu0 0
    %145 = vmatpush.bf16.msra.mxu0 0
    %146 = vmatpush.bf16.msra.mxu0 0
    %147 = vmatpush.bf16.msra.mxu0 0
    %148 = vmatpush.bf16.msra.mxu0 0
    %149 = vmatpush.bf16.msra.mxu0 0
    %150 = vmatpush.bf16.msra.mxu0 0
    %151 = vmatpush.bf16.msra.mxu0 %v93
    %152 = vmatmul.bf16.gmra.mxu0 %v100
    %v153 = vpop.f32.mrf.mxu0
    %v154 = vadd.f32 %v73, %v153
    %v155 = vpop.f32.mrf.mxu0
    %v156 = vadd.f32 %v73, %v155
    %157 = vdwg.mxu0
    %v158 = vpack.c.bf16 %v126, %v112
    %v159 = vpack.c.bf16 %v154, %v140
    %v160 = vpack.c.bf16 %v128, %v114
    %v161 = vpack.c.bf16 %v156, %v142
    %162 = vst [vmem:[#allocation8] sm:$0xff] %v158
    %163 = vst [vmem:[#allocation8 + $0x8] sm:$0xff] %v159
    %164 = vst [vmem:[#allocation8 + $0x10] sm:$0xff] %v160
    %165 = vst [vmem:[#allocation8 + $0x18] sm:$0xff] %v161
    // Predicated region
    $region26: #{tpu_custom_call.1} parent=1 // pred_check
      _
    $region27: #{tpu_custom_call.1} parent=1 // pred_check_branch
      %167 = sbr.rel (0) target = $region29
    $region28: #{tpu_custom_call.1} parent=1 // pred_region
      %169 = vsyncadd [#allocation4], 0
      %s170 = sshll.u32 [#allocation8], 4
      %s171 = int_to_ptr.vmem [resolvable:$true] %s170
      %s172 = sshll.u32 %s3, 4
      %s173 = int_to_ptr.hbm [resolvable:$true] %s172
      %178 = dma.vmem_to_hbm [thread:$0]  %s171, 512, %s173, [#allocation4], 256, 256, 16
    $region29: #{tpu_custom_call.1} parent=1 // pred_fallthru
      _
    // Predicated region
    $region30: #{tpu_custom_call.1} parent=1 // pred_check
      _
    $region31: #{tpu_custom_call.1} parent=1 // pred_check_branch
      %180 = sbr.rel (0) target = $region33
    $region32: #{tpu_custom_call.1} parent=1 // pred_region
      %182 = dma.done [#allocation4], 512
    $region33: #{tpu_custom_call.1} parent=1 // pred_fallthru
      _
    %183 = vsyncpa [#allocation3], 1
    %184 = vsyncpa [#allocation6], 1
    %185 = vsyncpa [#allocation4], 1

// kernel: tpu_custom_call.1
$region0: #{tpu_custom_call.1}
  #allocation0 [shape = 'u32[]', space=smem, size = 0x4, offset = 0x4, fixed_abs, tag = 'smem constant byte address 0x4 - core index']
  #allocation1 [shape = 'u32[72,128]{1,0:T(1,128)}', space=vmem, size = 0x9000, scoped, tag = 'internal scratch']
  %s0 = inlined_call_operand.hbm [shape: f32[16,16], index: 0, kind: input, shape index: {}]
  %s1 = inlined_call_operand.hbm [shape: bf16[16,512], index: 1, kind: input, shape index: {}]
  %s2 = inlined_call_operand.hbm [shape: f32[1,512], index: 2, kind: input, shape index: {}]
  %s3 = inlined_call_operand.hbm [shape: bf16[16,512], index: 3, kind: output, shape index: {}]
  %s4 = sld [smem:[#allocation0]]
  $region34: #{tpu_custom_call.1} parent=0
    _
  %s6 = ssub.s32 1, %s4
  %s7 = scalar_select 0, %s6, %s4
  $region1: #{tpu_custom_call.1} parent=0
    #allocation2 [shape = 'u8[8192]{0}', space=vmem, size = 0x2000, scoped, tag = 'input window, operand 0, single buffered']
    #allocation3 [shape = 's32[1]{0}', space=sflag, size = 0x4, scoped, tag = 'scoped memory for tpu_custom_call.1']
    #allocation4 [shape = 's32[1]{0}', space=sflag, size = 0x4, scoped, tag = 'scoped memory for tpu_custom_call.1']
    #allocation5 [shape = 'u8[16384]{0}', space=vmem, size = 0x4000, scoped, tag = 'input window, operand 1, single buffered']
    #allocation6 [shape = 's32[1]{0}', space=sflag, size = 0x4, scoped, tag = 'scoped memory for tpu_custom_call.1']
    #allocation7 [shape = 'u8[2048]{0}', space=vmem, size = 0x800, scoped, tag = 'input window, operand 2, single buffered']
    #allocation8 [shape = 'u8[16384]{0}', space=vmem, size = 0x4000, scoped, tag = 'output window, operand 0, single buffered']
    %8 = vsyncpa [#allocation3], 0
    %9 = vsyncpa [#allocation6], 0
    %10 = vsyncpa [#allocation4], 0
    // Predicated region
    $region2: #{tpu_custom_call.1} parent=1 // pred_check
      _
    $region3: #{tpu_custom_call.1} parent=1 // pred_check_branch
      %12 = sbr.rel (0) target = $region5
    $region4: #{tpu_custom_call.1} parent=1 // pred_region
      %14 = vsyncadd [#allocation3], 0
      %s15 = sshll.u32 %s0, 4
      %s16 = int_to_ptr.hbm [resolvable:$true] %s15
      %s17 = sshll.u32 [#allocation2], 4
      %s18 = int_to_ptr.vmem [resolvable:$true] %s17
      %23 = dma.hbm_to_vmem [thread:$0]  %s16, 256, %s18, [#allocation3], 128, 128, 8
    $region5: #{tpu_custom_call.1} parent=1 // pred_fallthru
      _
    // Predicated region
    $region6: #{tpu_custom_call.1} parent=1 // pred_check
      _
    $region7: #{tpu_custom_call.1} parent=1 // pred_check_branch
      %25 = sbr.rel (0) target = $region9
    $region8: #{tpu_custom_call.1} parent=1 // pred_region
      %27 = vsyncadd [#allocation6], 0
      %s28 = sshll.u32 %s1, 4
      %s29 = int_to_ptr.hbm [resolvable:$true] %s28
      %s30 = sshll.u32 [#allocation5], 4
      %s31 = int_to_ptr.vmem [resolvable:$true] %s30
      %36 = dma.hbm_to_vmem [thread:$0]  %s29, 512, %s31, [#allocation6], 256, 256, 16
    $region9: #{tpu_custom_call.1} parent=1 // pred_fallthru
      _
    // Predicated region
    $region10: #{tpu_custom_call.1} parent=1 // pred_check
      _
    $region11: #{tpu_custom_call.1} parent=1 // pred_check_branch
      %38 = sbr.rel (0) target = $region13
    $region12: #{tpu_custom_call.1} parent=1 // pred_region
      %40 = vsyncadd [#allocation6], 0
      %s42 = sshll.u32 %s2, 4
      %s43 = int_to_ptr.hbm [resolvable:$true] %s42
      %s44 = sshll.u32 [#allocation7], 4
      %s45 = int_to_ptr.vmem [resolvable:$true] %s44
      %47 = dma.hbm_to_vmem [thread:$0]  %s43, 64, %s45, [#allocation6]
    $region13: #{tpu_custom_call.1} parent=1 // pred_fallthru
      _
    // Predicated region
    $region14: #{tpu_custom_call.1} parent=1 // pred_check
      _
    $region15: #{tpu_custom_call.1} parent=1 // pred_check_branch
      %49 = sbr.rel (0) target = $region17
    $region16: #{tpu_custom_call.1} parent=1 // pred_region
      %51 = dma.done [#allocation3], 256
    $region17: #{tpu_custom_call.1} parent=1 // pred_fallthru
      _
    // Predicated region
    $region18: #{tpu_custom_call.1} parent=1 // pred_check
      _
    $region19: #{tpu_custom_call.1} parent=1 // pred_check_branch
      %53 = sbr.rel (0) target = $region21
    $region20: #{tpu_custom_call.1} parent=1 // pred_region
      %55 = dma.done [#allocation6], 512
    $region21: #{tpu_custom_call.1} parent=1 // pred_fallthru
      _
    // Predicated region
    $region22: #{tpu_custom_call.1} parent=1 // pred_check
      _
    $region23: #{tpu_custom_call.1} parent=1 // pred_check_branch
      %57 = sbr.rel (0) target = $region25
    $region24: #{tpu_custom_call.1} parent=1 // pred_region
      %59 = dma.done [#allocation6], 64
    $region25: #{tpu_custom_call.1} parent=1 // pred_fallthru
      _
    %v61 = vld [vmem:[#allocation2] sm:$0xff]
    %v62 = vld [vmem:[#allocation2 + $0x8] sm:$0xff]
    %v63 = vpack.c.bf16 %v62, %v61
    %v64 = vld [vmem:[#allocation5] sm:$0xff]
    %v65 = vld [vmem:[#allocation5 + $0x8] sm:$0xff]
    %v66 = vld [vmem:[#allocation5 + $0x10] sm:$0xff]
    %v67 = vld [vmem:[#allocation5 + $0x18] sm:$0xff]
    %v68 = vld [vmem:[#allocation7] sm:$0xf]
    %v70 = vperm.slane %v68, 0
    %v71 = vperm.slane %v68, 1
    %v72 = vperm.slane %v68, 2
    %v73 = vperm.slane %v68, 3
    %v82 = vunpack.c.l.b16 %v64
    %v83 = vunpack.c.h.b16 %v64
    %v84 = vunpack.c.l.b16 %v65
    %v85 = vunpack.c.h.b16 %v65
    %v86 = vunpack.c.l.b16 %v66
    %v87 = vunpack.c.h.b16 %v66
    %v88 = vunpack.c.l.b16 %v67
    %v89 = vunpack.c.h.b16 %v67
    %v90 = vpack.c.b16 %v86, %v82
    %v91 = vpack.c.b16 %v87, %v83
    %v92 = vpack.c.b16 %v88, %v84
    %v93 = vpack.c.b16 %v89, %v85
    %vm98 = vcmask 130048
    %v100 = vsel %vm98, %v63, 0
    %102 = vmatpush.bf16.msra.mxu0 0
    %103 = vmatpush.bf16.msra.mxu0 0
    %104 = vmatpush.bf16.msra.mxu0 0
    %105 = vmatpush.bf16.msra.mxu0 0
    %106 = vmatpush.bf16.msra.mxu0 0
    %107 = vmatpush.bf16.msra.mxu0 0
    %108 = vmatpush.bf16.msra.mxu0 0
    %109 = vmatpush.bf16.msra.mxu0 %v90
    %110 = vmatmul.bf16.gmra.mxu0 %v100
    %v111 = vpop.f32.mrf.mxu0
    %v112 = vadd.f32 %v70, %v111
    %v113 = vpop.f32.mrf.mxu0
    %v114 = vadd.f32 %v70, %v113
    %115 = vdwg.mxu0
    %116 = vmatpush.bf16.msra.mxu0 0
    %117 = vmatpush.bf16.msra.mxu0 0
    %118 = vmatpush.bf16.msra.mxu0 0
    %119 = vmatpush.bf16.msra.mxu0 0
    %120 = vmatpush.bf16.msra.mxu0 0
    %121 = vmatpush.bf16.msra.mxu0 0
    %122 = vmatpush.bf16.msra.mxu0 0
    %123 = vmatpush.bf16.msra.mxu0 %v91
    %124 = vmatmul.bf16.gmra.mxu0 %v100
    %v125 = vpop.f32.mrf.mxu0
    %v126 = vadd.f32 %v71, %v125
    %v127 = vpop.f32.mrf.mxu0
    %v128 = vadd.f32 %v71, %v127
    %129 = vdwg.mxu0
    %130 = vmatpush.bf16.msra.mxu0 0
    %131 = vmatpush.bf16.msra.mxu0 0
    %132 = vmatpush.bf16.msra.mxu0 0
    %133 = vmatpush.bf16.msra.mxu0 0
    %134 = vmatpush.bf16.msra.mxu0 0
    %135 = vmatpush.bf16.msra.mxu0 0
    %136 = vmatpush.bf16.msra.mxu0 0
    %137 = vmatpush.bf16.msra.mxu0 %v92
    %138 = vmatmul.bf16.gmra.mxu0 %v100
    %v139 = vpop.f32.mrf.mxu0
    %v140 = vadd.f32 %v72, %v139
    %v141 = vpop.f32.mrf.mxu0
    %v142 = vadd.f32 %v72, %v141
    %143 = vdwg.mxu0
    %144 = vmatpush.bf16.msra.mxu0 0
    %145 = vmatpush.bf16.msra.mxu0 0
    %146 = vmatpush.bf16.msra.mxu0 0
    %147 = vmatpush.bf16.msra.mxu0 0
    %148 = vmatpush.bf16.msra.mxu0 0
    %149 = vmatpush.bf16.msra.mxu0 0
    %150 = vmatpush.bf16.msra.mxu0 0
    %151 = vmatpush.bf16.msra.mxu0 %v93
    %152 = vmatmul.bf16.gmra.mxu0 %v100
    %v153 = vpop.f32.mrf.mxu0
    %v154 = vadd.f32 %v73, %v153
    %v155 = vpop.f32.mrf.mxu0
    %v156 = vadd.f32 %v73, %v155
    %157 = vdwg.mxu0
    %v158 = vpack.c.bf16 %v126, %v112
    %v159 = vpack.c.bf16 %v154, %v140
    %v160 = vpack.c.bf16 %v128, %v114
    %v161 = vpack.c.bf16 %v156, %v142
    %162 = vst [vmem:[#allocation8] sm:$0xff] %v158
    %163 = vst [vmem:[#allocation8 + $0x8] sm:$0xff] %v159
    %164 = vst [vmem:[#allocation8 + $0x10] sm:$0xff] %v160
    %165 = vst [vmem:[#allocation8 + $0x18] sm:$0xff] %v161
    // Predicated region
    $region26: #{tpu_custom_call.1} parent=1 // pred_check
      _
    $region27: #{tpu_custom_call.1} parent=1 // pred_check_branch
      %167 = sbr.rel (0) target = $region29
    $region28: #{tpu_custom_call.1} parent=1 // pred_region
      %169 = vsyncadd [#allocation4], 0
      %s170 = sshll.u32 [#allocation8], 4
      %s171 = int_to_ptr.vmem [resolvable:$true] %s170
      %s172 = sshll.u32 %s3, 4
      %s173 = int_to_ptr.hbm [resolvable:$true] %s172
      %178 = dma.vmem_to_hbm [thread:$0]  %s171, 512, %s173, [#allocation4], 256, 256, 16
    $region29: #{tpu_custom_call.1} parent=1 // pred_fallthru
      _
    // Predicated region
    $region30: #{tpu_custom_call.1} parent=1 // pred_check
      _
    $region31: #{tpu_custom_call.1} parent=1 // pred_check_branch
      %180 = sbr.rel (0) target = $region33
    $region32: #{tpu_custom_call.1} parent=1 // pred_region
      %182 = dma.done [#allocation4], 512
    $region33: #{tpu_custom_call.1} parent=1 // pred_fallthru
      _
    %183 = vsyncpa [#allocation3], 1
    %184 = vsyncpa [#allocation6], 1
    %185 = vsyncpa [#allocation4], 1

</llo_original>
